<compile_context>
chip_gen: v6e
topology: v6e:2x2x1
jax: 0.10.0
libtpu: 0.0.40
codegen_flags: <defaults>
</compile_context>

<pallas_src>
import math
import jax
import jax.numpy as jnp
from jax.experimental import pallas as pl
from jax.experimental.pallas import tpu as pltpu


def _round_up(a: int, b: int) -> int:
    return (a + b - 1) // b * b


# ---------------------------------------------------------------------------
# Pallas kernel: full MLP hot path in transposed (feature-major) layout.
#   y_ref, x_ref, t_ref : (1, TN)   lane-dense batch rows
#   w_in_t_ref          : (H, 3)    f32  = W_in^T
#   b_in_t_ref          : (H, 1)    f32
#   w_hid_t_ref         : (L, H, H) bf16 = W_i^T   (only if n_hidden_layers > 0)
#   b_hid_t_ref         : (L, H, 1) f32
#   w_out_neg_t_ref     : (1, H)    bf16 = -W_out^T  (negation folded in)
#   b_out_neg_ref       : (1, 1)    f32  = -b_out
#   out_ref             : (1, TN)   f32  lane-dense output row
# ---------------------------------------------------------------------------
def make_tip_mlp_kernel(n_hidden_layers: int):
    def _body(y_ref, x_ref, t_ref, w_in_t_ref, b_in_t_ref,
              w_hid_t_ref, b_hid_t_ref, w_out_neg_t_ref, b_out_neg_ref,
              out_ref):
        w_in_t = w_in_t_ref[...]                        # (H, 3) f32

        # Input layer as 3 VPU broadcast-FMAs (avoids a depth-3 MXU pass).
        # (H,1)x(1,TN) outer-product broadcasts lower to lane/sublane
        # replication on the VPU path; cost is negligible at large TN.
        h = (w_in_t[:, 0:1] * y_ref[...]
             + w_in_t[:, 1:2] * x_ref[...]
             + w_in_t[:, 2:3] * t_ref[...]
             + b_in_t_ref[...])                          # (H, TN) f32
        h = jnp.maximum(h, 0.0)

        # Hidden layers: (H, H) bf16 @ (H, TN) bf16 -> f32 accumulate on MXU.
        for i in range(n_hidden_layers):
            hh = jnp.dot(w_hid_t_ref[i], h.astype(jnp.bfloat16),
                         preferred_element_type=jnp.float32)
            h = jnp.maximum(hh + b_hid_t_ref[i], 0.0)    # (H, TN) f32

        # Output layer with negation pre-folded into the params:
        #   out = (-W_out^T) @ h + (-b_out)  ==  -(h^T @ W_out + b_out)^T
        out = jnp.dot(w_out_neg_t_ref[...], h.astype(jnp.bfloat16),
                      preferred_element_type=jnp.float32) + b_out_neg_ref[...]
        out_ref[...] = out                               # (1, TN) lane-dense

    if n_hidden_layers > 0:
        def kernel(y_ref, x_ref, t_ref, w_in_t_ref, b_in_t_ref,
                   w_hid_t_ref, b_hid_t_ref, w_out_neg_t_ref, b_out_neg_ref,
                   out_ref):
            _body(y_ref, x_ref, t_ref, w_in_t_ref, b_in_t_ref,
                  w_hid_t_ref, b_hid_t_ref, w_out_neg_t_ref, b_out_neg_ref,
                  out_ref)
    else:
        def kernel(y_ref, x_ref, t_ref, w_in_t_ref, b_in_t_ref,
                   w_out_neg_t_ref, b_out_neg_ref, out_ref):
            _body(y_ref, x_ref, t_ref, w_in_t_ref, b_in_t_ref,
                  None, None, w_out_neg_t_ref, b_out_neg_ref, out_ref)
    return kernel


# ---------------------------------------------------------------------------
# Parameter construction (deterministic, mimics nn.Linear default init).
# Weights stored in the "math" orientation: W (fan_in, fan_out), b (1, fan_out).
# ---------------------------------------------------------------------------
def init_params(key, n_hidden_layers, n_nodes, dtype=jnp.float32):
    n_input, n_output = 3, 1

    def linear_init(k, fan_in, fan_out):
        kw, kb = jax.random.split(k)
        bound = 1.0 / math.sqrt(fan_in)
        w = jax.random.uniform(kw, (fan_in, fan_out), dtype, -bound, bound)
        b = jax.random.uniform(kb, (1, fan_out), dtype, -bound, bound)
        return w, b

    keys = jax.random.split(key, n_hidden_layers + 2)
    w_in, b_in = linear_init(keys[0], n_input, n_nodes)

    params = dict(w_in=w_in, b_in=b_in)
    if n_hidden_layers > 0:
        w_hid_list, b_hid_list = [], []
        for i in range(n_hidden_layers):
            w, b = linear_init(keys[1 + i], n_nodes, n_nodes)
            w_hid_list.append(w)
            b_hid_list.append(b)
        params["w_hid"] = jnp.stack(w_hid_list, axis=0)       # (L, H, H)
        params["b_hid"] = jnp.stack(b_hid_list, axis=0)       # (L, 1, H)

    w_out, b_out = linear_init(keys[-1], n_nodes, n_output)
    params["w_out"] = w_out
    params["b_out"] = b_out
    return params


# ---------------------------------------------------------------------------
# One-time parameter prep for the kernel layout:
# transpose, fold the final negation, and pre-cast MXU operands to bf16.
# ---------------------------------------------------------------------------
def prepare_kernel_params(params, n_hidden_layers):
    kp = dict(
        w_in_t=jnp.asarray(params["w_in"], jnp.float32).T,            # (H, 3) f32
        b_in_t=jnp.asarray(params["b_in"], jnp.float32).T,            # (H, 1) f32
        w_out_neg_t=(-jnp.asarray(params["w_out"]).T).astype(jnp.bfloat16),  # (1, H) bf16
        b_out_neg=(-jnp.asarray(params["b_out"])).astype(jnp.float32),       # (1, 1) f32
    )
    if n_hidden_layers > 0:
        kp["w_hid_t"] = jnp.swapaxes(params["w_hid"], 1, 2).astype(jnp.bfloat16)  # (L,H,H)
        kp["b_hid_t"] = jnp.swapaxes(params["b_hid"], 1, 2).astype(jnp.float32)   # (L,H,1)
    return kp


# ---------------------------------------------------------------------------
# Wrapper: feed y/x/t as zero-copy (1, N) rows, pick a large lane tile that
# still gives >= `min_grid` steps (2-TC sharding on v7x), ragged last block
# (no padding pass), and return either the (N, 1) column (module semantics)
# or the raw lane-dense (1, N) row.
# ---------------------------------------------------------------------------
def tip_shape_mlp_forward(kparams, x, y, t, n_hidden_layers, *,
                          tn_max=8192, min_grid=2, return_column=True):
    assert x.shape == y.shape == t.shape and x.ndim == 1, \
        "x, y, t must be 1-D and the same length"
    n = x.shape[0]

    # torch.stack((y, x, t), dim=1) -> transposed layout rows (y, x, t).
    # (N,) -> (1, N) is a free bitcast reshape; no stack/pad HBM passes.
    y_row = y.astype(jnp.float32).reshape(1, n)
    x_row = x.astype(jnp.float32).reshape(1, n)
    t_row = t.astype(jnp.float32).reshape(1, n)

    # Lane tile: large (amortize ~0.35us/step overhead) but small enough that
    # the grid keeps >= min_grid steps so ("parallel",) shards across both
    # TensorCores on v7x.  Always a multiple of 128.
    tn = max(128, min(tn_max, _round_up(pl.cdiv(n, min_grid), 128)))
    grid = (pl.cdiv(n, tn),)

    kernel = make_tip_mlp_kernel(n_hidden_layers)

    row_spec = pl.BlockSpec((1, tn), lambda i: (0, i))
    in_specs = [
        row_spec, row_spec, row_spec,                               # y, x, t tiles
        pl.BlockSpec(kparams["w_in_t"].shape, lambda i: (0, 0)),    # resident weights
        pl.BlockSpec(kparams["b_in_t"].shape, lambda i: (0, 0)),
    ]
    args = [y_row, x_row, t_row, kparams["w_in_t"], kparams["b_in_t"]]
    if n_hidden_layers > 0:
        in_specs += [
            pl.BlockSpec(kparams["w_hid_t"].shape, lambda i: (0, 0, 0)),
            pl.BlockSpec(kparams["b_hid_t"].shape, lambda i: (0, 0, 0)),
        ]
        args += [kparams["w_hid_t"], kparams["b_hid_t"]]
    in_specs += [
        pl.BlockSpec(kparams["w_out_neg_t"].shape, lambda i: (0, 0)),
        pl.BlockSpec(kparams["b_out_neg"].shape, lambda i: (0, 0)),
    ]
    args += [kparams["w_out_neg_t"], kparams["b_out_neg"]]

    out = pl.pallas_call(
        kernel,
        out_shape=jax.ShapeDtypeStruct((1, n), jnp.float32),
        grid=grid,
        in_specs=in_specs,
        out_specs=pl.BlockSpec((1, tn), lambda i: (0, i)),
        compiler_params=pltpu.CompilerParams(
            dimension_semantics=("parallel",)),   # shards batch across TCs on v7x
    )(*args)

    if return_column:
        # (1, N) -> (N, 1): same element order, free reshape (no extra HBM pass).
        return out.reshape(n, 1)
    return out  # lane-dense (1, N) row; negation already applied


# ---------------------------------------------------------------------------
# Pure-JAX reference (row-major, un-transposed f32 params) for correctness.
# ---------------------------------------------------------------------------
def tip_shape_mlp_ref(params, x, y, t, n_hidden_layers):
    hp = jax.lax.Precision.HIGHEST
    xyt = jnp.stack((y, x, t), axis=1).astype(jnp.float32)
    h = jnp.maximum(jnp.dot(xyt, params["w_in"], precision=hp) + params["b_in"], 0.0)
    for i in range(n_hidden_layers):
        h = jnp.maximum(
            jnp.dot(h, params["w_hid"][i], precision=hp) + params["b_hid"][i], 0.0)
    out = jnp.dot(h, params["w_out"], precision=hp) + params["b_out"]
    return -out


if __name__ == "__main__":
    # Small shapes consistent with the module: N points, 3 input features.
    N = 1000                # not a multiple of 128 -> exercises ragged last block
    N_NODES = 32
    N_HIDDEN_LAYERS = 2
    # n_size is stored by the torch module but never used in forward().

    key = jax.random.PRNGKey(0)
    kx, ky, kt, kp = jax.random.split(key, 4)
    x = jax.random.normal(kx, (N,), jnp.float32)
    y = jax.random.normal(ky, (N,), jnp.float32)
    t = jax.random.normal(kt, (N,), jnp.float32)

    params = init_params(kp, N_HIDDEN_LAYERS, N_NODES)
    kparams = prepare_kernel_params(params, N_HIDDEN_LAYERS)

    out = tip_shape_mlp_forward(kparams, x, y, t, N_HIDDEN_LAYERS)
    out = jax.block_until_ready(out)

    ref = tip_shape_mlp_ref(params, x, y, t, N_HIDDEN_LAYERS)
    assert out.shape == (N, 1)
    # bf16 MXU operands with f32 accumulation over a 32-deep contraction and
    # 3 linear layers: ~1e-2 relative error is expected; use a loose tolerance.
    assert jnp.allclose(out, ref, atol=2e-2, rtol=2e-2), "mismatch vs reference"

    print("KERNEL_OK")
</pallas_src>

<mosaic_0001>
module attributes {stable_mosaic.version = 11 : i64} {
  func.func @kernel(%arg0: i32, %arg1: memref<1x512xf32, #tpu.memory_space<vmem>>, %arg2: memref<1x512xf32, #tpu.memory_space<vmem>>, %arg3: memref<1x512xf32, #tpu.memory_space<vmem>>, %arg4: memref<32x3xf32, #tpu.memory_space<vmem>>, %arg5: memref<32x1xf32, #tpu.memory_space<vmem>>, %arg6: memref<2x32x32xbf16, #tpu.memory_space<vmem>>, %arg7: memref<2x32x1xf32, #tpu.memory_space<vmem>>, %arg8: memref<1x32xbf16, #tpu.memory_space<vmem>>, %arg9: memref<1x1xf32, #tpu.memory_space<vmem>>, %arg10: memref<1x512xf32, #tpu.memory_space<vmem>>) attributes {dimension_semantics = [#tpu.dimension_semantics<parallel>], iteration_bounds = array<i64: 2>, scalar_prefetch = 0 : i64, scratch_operands = 0 : i64, tpu.core_type = #tpu.core_type<tc>, window_params = [{transform_indices = @transform_0, window_bounds = array<i64: 1, 512>}, {transform_indices = @transform_1, window_bounds = array<i64: 1, 512>}, {transform_indices = @transform_2, window_bounds = array<i64: 1, 512>}, {pipeline_mode = #tpu.pipeline_mode<synchronous>, transform_indices = @transform_3, window_bounds = array<i64: 32, 3>}, {pipeline_mode = #tpu.pipeline_mode<synchronous>, transform_indices = @transform_4, window_bounds = array<i64: 32, 1>}, {pipeline_mode = #tpu.pipeline_mode<synchronous>, transform_indices = @transform_5, window_bounds = array<i64: 2, 32, 32>}, {pipeline_mode = #tpu.pipeline_mode<synchronous>, transform_indices = @transform_6, window_bounds = array<i64: 2, 32, 1>}, {pipeline_mode = #tpu.pipeline_mode<synchronous>, transform_indices = @transform_7, window_bounds = array<i64: 1, 32>}, {pipeline_mode = #tpu.pipeline_mode<synchronous>, transform_indices = @transform_8, window_bounds = array<i64: 1, 1>}, {transform_indices = @transform_9, window_bounds = array<i64: 1, 512>}]} {
    %c0 = arith.constant 0 : index
    %c0_0 = arith.constant 0 : index
    %0 = vector.load %arg4[%c0, %c0_0] : memref<32x3xf32, #tpu.memory_space<vmem>>, vector<32x3xf32>
    %1 = vector.extract_strided_slice %0 {offsets = [0, 0], sizes = [32, 1], strides = [1, 1]} : vector<32x3xf32> to vector<32x1xf32>
    %c0_1 = arith.constant 0 : index
    %c0_2 = arith.constant 0 : index
    %2 = vector.load %arg1[%c0_1, %c0_2] : memref<1x512xf32, #tpu.memory_space<vmem>>, vector<1x512xf32>
    %3 = vector.broadcast %1 : vector<32x1xf32> to vector<32x512xf32>
    %4 = vector.broadcast %2 : vector<1x512xf32> to vector<32x512xf32>
    %5 = arith.mulf %3, %4 : vector<32x512xf32>
    %6 = vector.extract_strided_slice %0 {offsets = [0, 1], sizes = [32, 1], strides = [1, 1]} : vector<32x3xf32> to vector<32x1xf32>
    %c0_3 = arith.constant 0 : index
    %c0_4 = arith.constant 0 : index
    %7 = vector.load %arg2[%c0_3, %c0_4] : memref<1x512xf32, #tpu.memory_space<vmem>>, vector<1x512xf32>
    %8 = vector.broadcast %6 : vector<32x1xf32> to vector<32x512xf32>
    %9 = vector.broadcast %7 : vector<1x512xf32> to vector<32x512xf32>
    %10 = arith.mulf %8, %9 : vector<32x512xf32>
    %11 = arith.addf %5, %10 : vector<32x512xf32>
    %12 = vector.extract_strided_slice %0 {offsets = [0, 2], sizes = [32, 1], strides = [1, 1]} : vector<32x3xf32> to vector<32x1xf32>
    %c0_5 = arith.constant 0 : index
    %c0_6 = arith.constant 0 : index
    %13 = vector.load %arg3[%c0_5, %c0_6] : memref<1x512xf32, #tpu.memory_space<vmem>>, vector<1x512xf32>
    %14 = vector.broadcast %12 : vector<32x1xf32> to vector<32x512xf32>
    %15 = vector.broadcast %13 : vector<1x512xf32> to vector<32x512xf32>
    %16 = arith.mulf %14, %15 : vector<32x512xf32>
    %17 = arith.addf %11, %16 : vector<32x512xf32>
    %c0_7 = arith.constant 0 : index
    %c0_8 = arith.constant 0 : index
    %18 = vector.load %arg5[%c0_7, %c0_8] : memref<32x1xf32, #tpu.memory_space<vmem>>, vector<32x1xf32>
    %19 = vector.broadcast %18 : vector<32x1xf32> to vector<32x512xf32>
    %20 = arith.addf %17, %19 : vector<32x512xf32>
    %cst = arith.constant 0.000000e+00 : f32
    %21 = vector.broadcast %cst : f32 to vector<32x512xf32>
    %22 = arith.maximumf %20, %21 : vector<32x512xf32>
    %c0_9 = arith.constant 0 : index
    %c0_10 = arith.constant 0 : index
    %c0_11 = arith.constant 0 : index
    %23 = vector.load %arg6[%c0_9, %c0_10, %c0_11] : memref<2x32x32xbf16, #tpu.memory_space<vmem>>, vector<1x32x32xbf16>
    %24 = vector.shape_cast %23 : vector<1x32x32xbf16> to vector<32x32xbf16>
    %25 = arith.truncf %22 : vector<32x512xf32> to vector<32x512xbf16>
    %cst_12 = arith.constant dense<0.000000e+00> : vector<32x512xf32>
    %26 = tpu.matmul %24, %25, %cst_12 {dimension_numbers = #tpu.dot_dimension_numbers<[1], [0], [0], [1], [0, 0, 1, 1], [], []>} : vector<32x32xbf16>, vector<32x512xbf16>, vector<32x512xf32> -> vector<32x512xf32>
    %c0_13 = arith.constant 0 : index
    %c0_14 = arith.constant 0 : index
    %c0_15 = arith.constant 0 : index
    %27 = vector.load %arg7[%c0_13, %c0_14, %c0_15] : memref<2x32x1xf32, #tpu.memory_space<vmem>>, vector<1x32x1xf32>
    %28 = vector.shape_cast %27 : vector<1x32x1xf32> to vector<32x1xf32>
    %29 = vector.broadcast %28 : vector<32x1xf32> to vector<32x512xf32>
    %30 = arith.addf %26, %29 : vector<32x512xf32>
    %cst_16 = arith.constant 0.000000e+00 : f32
    %31 = vector.broadcast %cst_16 : f32 to vector<32x512xf32>
    %32 = arith.maximumf %30, %31 : vector<32x512xf32>
    %c1 = arith.constant 1 : index
    %c0_17 = arith.constant 0 : index
    %c0_18 = arith.constant 0 : index
    %33 = vector.load %arg6[%c1, %c0_17, %c0_18] : memref<2x32x32xbf16, #tpu.memory_space<vmem>>, vector<1x32x32xbf16>
    %34 = vector.shape_cast %33 : vector<1x32x32xbf16> to vector<32x32xbf16>
    %35 = arith.truncf %32 : vector<32x512xf32> to vector<32x512xbf16>
    %cst_19 = arith.constant dense<0.000000e+00> : vector<32x512xf32>
    %36 = tpu.matmul %34, %35, %cst_19 {dimension_numbers = #tpu.dot_dimension_numbers<[1], [0], [0], [1], [0, 0, 1, 1], [], []>} : vector<32x32xbf16>, vector<32x512xbf16>, vector<32x512xf32> -> vector<32x512xf32>
    %c1_20 = arith.constant 1 : index
    %c0_21 = arith.constant 0 : index
    %c0_22 = arith.constant 0 : index
    %37 = vector.load %arg7[%c1_20, %c0_21, %c0_22] : memref<2x32x1xf32, #tpu.memory_space<vmem>>, vector<1x32x1xf32>
    %38 = vector.shape_cast %37 : vector<1x32x1xf32> to vector<32x1xf32>
    %39 = vector.broadcast %38 : vector<32x1xf32> to vector<32x512xf32>
    %40 = arith.addf %36, %39 : vector<32x512xf32>
    %cst_23 = arith.constant 0.000000e+00 : f32
    %41 = vector.broadcast %cst_23 : f32 to vector<32x512xf32>
    %42 = arith.maximumf %40, %41 : vector<32x512xf32>
    %c0_24 = arith.constant 0 : index
    %c0_25 = arith.constant 0 : index
    %43 = vector.load %arg8[%c0_24, %c0_25] : memref<1x32xbf16, #tpu.memory_space<vmem>>, vector<1x32xbf16>
    %44 = arith.truncf %42 : vector<32x512xf32> to vector<32x512xbf16>
    %cst_26 = arith.constant dense<0.000000e+00> : vector<1x512xf32>
    %45 = tpu.matmul %43, %44, %cst_26 {dimension_numbers = #tpu.dot_dimension_numbers<[1], [0], [0], [1], [0, 0, 1, 1], [], []>} : vector<1x32xbf16>, vector<32x512xbf16>, vector<1x512xf32> -> vector<1x512xf32>
    %c0_27 = arith.constant 0 : index
    %c0_28 = arith.constant 0 : index
    %46 = vector.load %arg9[%c0_27, %c0_28] : memref<1x1xf32, #tpu.memory_space<vmem>>, vector<1x1xf32>
    %47 = vector.broadcast %46 : vector<1x1xf32> to vector<1x512xf32>
    %48 = arith.addf %45, %47 : vector<1x512xf32>
    %c0_29 = arith.constant 0 : index
    %c0_30 = arith.constant 0 : index
    %49 = vector.load %arg10[%c0_29, %c0_30] : memref<1x512xf32, #tpu.memory_space<vmem>>, vector<1x512xf32>
    tpu.vector_store %arg10[%c0_29, %c0_30], %48 {strides = array<i32>} : memref<1x512xf32, #tpu.memory_space<vmem>>, vector<1x512xf32>,
    return
  }
  func.func @transform_0(%arg0: i32) -> (i32, i32) {
    %c0_i32 = arith.constant 0 : i32
    %c0_i32_0 = arith.constant 0 : i32
    return %c0_i32, %arg0 : i32, i32
  }
  func.func @transform_1(%arg0: i32) -> (i32, i32) {
    %c0_i32 = arith.constant 0 : i32
    %c0_i32_0 = arith.constant 0 : i32
    return %c0_i32, %arg0 : i32, i32
  }
  func.func @transform_2(%arg0: i32) -> (i32, i32) {
    %c0_i32 = arith.constant 0 : i32
    %c0_i32_0 = arith.constant 0 : i32
    return %c0_i32, %arg0 : i32, i32
  }
  func.func @transform_3(%arg0: i32) -> (i32, i32) {
    %c0_i32 = arith.constant 0 : i32
    %c0_i32_0 = arith.constant 0 : i32
    %c0_i32_1 = arith.constant 0 : i32
    return %c0_i32, %c0_i32_0 : i32, i32
  }
  func.func @transform_4(%arg0: i32) -> (i32, i32) {
    %c0_i32 = arith.constant 0 : i32
    %c0_i32_0 = arith.constant 0 : i32
    %c0_i32_1 = arith.constant 0 : i32
    return %c0_i32, %c0_i32_0 : i32, i32
  }
  func.func @transform_5(%arg0: i32) -> (i32, i32, i32) {
    %c0_i32 = arith.constant 0 : i32
    %c0_i32_0 = arith.constant 0 : i32
    %c0_i32_1 = arith.constant 0 : i32
    %c0_i32_2 = arith.constant 0 : i32
    return %c0_i32, %c0_i32_0, %c0_i32_1 : i32, i32, i32
  }
  func.func @transform_6(%arg0: i32) -> (i32, i32, i32) {
    %c0_i32 = arith.constant 0 : i32
    %c0_i32_0 = arith.constant 0 : i32
    %c0_i32_1 = arith.constant 0 : i32
    %c0_i32_2 = arith.constant 0 : i32
    return %c0_i32, %c0_i32_0, %c0_i32_1 : i32, i32, i32
  }
  func.func @transform_7(%arg0: i32) -> (i32, i32) {
    %c0_i32 = arith.constant 0 : i32
    %c0_i32_0 = arith.constant 0 : i32
    %c0_i32_1 = arith.constant 0 : i32
    return %c0_i32, %c0_i32_0 : i32, i32
  }
  func.func @transform_8(%arg0: i32) -> (i32, i32) {
    %c0_i32 = arith.constant 0 : i32
    %c0_i32_0 = arith.constant 0 : i32
    %c0_i32_1 = arith.constant 0 : i32
    return %c0_i32, %c0_i32_0 : i32, i32
  }
  func.func @transform_9(%arg0: i32) -> (i32, i32) {
    %c0_i32 = arith.constant 0 : i32
    %c0_i32_0 = arith.constant 0 : i32
    return %c0_i32, %arg0 : i32, i32
  }
}

</mosaic_0001>

<llo_original>
// kernel: tpu_custom_call.1
$region0: #{tpu_custom_call.1}
  #allocation0 [shape = 'u32[]', space=smem, size = 0x4, offset = 0x4, fixed_abs, tag = 'smem constant byte address 0x4 - core index']
  #allocation1 [shape = 'u32[144,128]{1,0:T(1,128)}', space=vmem, size = 0x12000, scoped, tag = 'internal scratch']
  #allocation2 [shape = 'f32[1,1]{1,0:T(1,128)S(1)}', space=vmem, size = 0x200, scoped, tag = 'scoped memory for tpu_custom_call.1']
  %s0 = inlined_call_operand.vmem [shape: f32[1,1000], index: 0, kind: input, shape index: {}]
  %s1 = inlined_call_operand.vmem [shape: f32[1,1000], index: 1, kind: input, shape index: {}]
  %s2 = inlined_call_operand.vmem [shape: f32[1,1000], index: 2, kind: input, shape index: {}]
  %s3 = inlined_call_operand.vmem [shape: f32[32,3], index: 3, kind: input, shape index: {}]
  %s4 = inlined_call_operand.vmem [shape: f32[32,1], index: 4, kind: input, shape index: {}]
  %s5 = inlined_call_operand.vmem [shape: bf16[2,32,32], index: 5, kind: input, shape index: {}]
  %s6 = inlined_call_operand.vmem [shape: f32[2,32,1], index: 6, kind: input, shape index: {}]
  %s7 = inlined_call_operand.vmem [shape: bf16[1,32], index: 7, kind: input, shape index: {}]
  %s8 = inlined_call_operand.<no memory space> [shape: f32[1,1], index: 8, kind: input, shape index: {}]
  %s9 = inlined_call_operand.hbm [shape: f32[1,1000], index: 9, kind: output, shape index: {}]
  %s10 = sld [smem:[#allocation0]]
  $region69: #{tpu_custom_call.1} parent=0
    _
  %s12 = ssub.s32 1, %s10
  %s13 = scalar_select 0, %s12, %s10
  %v14 = vstv %s8
  %15 = vst [vmem:[#allocation2] sm:$0x1] %v14
  $region1: #{tpu_custom_call.1} parent=0
    #allocation3 [shape = 'u8[4096]{0}', space=vmem, size = 0x1000, scoped, tag = 'output window, operand 0']
    #allocation4 [shape = 's32[2]{0}', space=sflag, size = 0x8, scoped, tag = 'scoped memory for tpu_custom_call.1']
    %16 = vsyncpa [#allocation4], 0
    %s17 = scalar_lea.sflag [#allocation4], 1
    %18 = vsyncpa %s17, 0
    loop: start=0, step=1, limit=4
    $region2: #{tpu_custom_call.1} parent=1 // loop_pre_header
      _
    $region3: #{tpu_custom_call.1} parent=1 // loop_header
      %s20 = sphi 0, %s24
      %p21 = scmp.ge.s32.totalorder %s20, 4
      %s30 = sphi 0, %s32
      %s33 = sphi 0, %s30
      %s34 = sphi 0, %s33
      %s50 = sphi 0, %s34
      %s56 = sphi 0, %s58
      %s59 = sphi 0, %s56
      %s60 = sphi 0, %s59
      %s76 = sphi 0, %s60
      %s82 = sphi 0, %s84
      %s85 = sphi 0, %s82
      %s86 = sphi 0, %s85
      %s102 = sphi 0, %s86
      %s106 = sphi 0, %s106
      %s108 = sphi 0, %s106
      %s109 = sphi 0, %s108
      %s123 = sphi 0, %s109
      %s127 = sphi 0, %s127
      %s129 = sphi 0, %s127
      %s130 = sphi 0, %s129
      %s144 = sphi 0, %s130
      %s148 = sphi 0, %s148
      %s150 = sphi 0, %s148
      %s151 = sphi 0, %s150
      %s165 = sphi 0, %s151
      %s169 = sphi 0, %s169
      %s171 = sphi 0, %s169
      %s172 = sphi 0, %s171
      %s186 = sphi 0, %s172
      %s190 = sphi 0, %s190
      %s192 = sphi 0, %s190
      %s193 = sphi 0, %s192
      %s207 = sphi 0, %s193
      %s211 = sphi 0, %s211
      %s213 = sphi 0, %s211
      %s214 = sphi 0, %s213
      %s228 = sphi 0, %s214
      %s234 = sphi 0, %s236
      %s237 = sphi 0, %s234
      %s238 = sphi 0, %s237
      %s254 = sphi 0, %s238
    $region4: #{tpu_custom_call.1} parent=1 // loop_header_branch
      %23 = sbr.rel (%p21) target = $region8
    $region5: #{tpu_custom_call.1} parent=1 // loop_body
      %s25 = ssub.s32 %s20, 1
      %s26 = ssub.s32 %s20, 2
      %s27 = sadd.s32 %s20, 1
      %s28 = ssub.s32 %s20, %s27
      %p29 = scmp.eq.s32.totalorder %s28, 0
      %s31 = sadd.s32 %s30, 1
      %s32 = scalar_select %p29, %s30, %s31
      %p35 = pneg %p29
      %p36 = scmp.eq.s32.totalorder %s20, 1
      %p37 = por %p35, %p36
      %p38 = scmp.ne.s32.totalorder %s30, %s33
      %p39 = scmp.eq.s32.totalorder %s20, 0
      %p40 = por %p38, %p39
      %p41 = scmp.ne.s32.totalorder %s30, %s33
      %p42 = scmp.eq.s32.totalorder %s25, 1
      %p43 = por %p41, %p42
      %p44 = scmp.ne.s32.totalorder %s33, %s34
      %p45 = scmp.eq.s32.totalorder %s25, 0
      %p46 = por %p44, %p45
      %p47 = scmp.ne.s32.totalorder %s33, %s34
      %p48 = scmp.eq.s32.totalorder %s26, 1
      %p49 = por %p47, %p48
      %p51 = scmp.ne.s32.totalorder %s34, %s50
      %p52 = scmp.eq.s32.totalorder %s26, 0
      %p53 = por %p51, %p52
      %s54 = ssub.s32 %s20, %s27
      %p55 = scmp.eq.s32.totalorder %s54, 0
      %s57 = sadd.s32 %s56, 1
      %s58 = scalar_select %p55, %s56, %s57
      %p61 = pneg %p55
      %p62 = scmp.eq.s32.totalorder %s20, 1
      %p63 = por %p61, %p62
      %p64 = scmp.ne.s32.totalorder %s56, %s59
      %p65 = scmp.eq.s32.totalorder %s20, 0
      %p66 = por %p64, %p65
      %p67 = scmp.ne.s32.totalorder %s56, %s59
      %p68 = scmp.eq.s32.totalorder %s25, 1
      %p69 = por %p67, %p68
      %p70 = scmp.ne.s32.totalorder %s59, %s60
      %p71 = scmp.eq.s32.totalorder %s25, 0
      %p72 = por %p70, %p71
      %p73 = scmp.ne.s32.totalorder %s59, %s60
      %p74 = scmp.eq.s32.totalorder %s26, 1
      %p75 = por %p73, %p74
      %p77 = scmp.ne.s32.totalorder %s60, %s76
      %p78 = scmp.eq.s32.totalorder %s26, 0
      %p79 = por %p77, %p78
      %s80 = ssub.s32 %s20, %s27
      %p81 = scmp.eq.s32.totalorder %s80, 0
      %s83 = sadd.s32 %s82, 1
      %s84 = scalar_select %p81, %s82, %s83
      %p87 = pneg %p81
      %p88 = scmp.eq.s32.totalorder %s20, 1
      %p89 = por %p87, %p88
      %p90 = scmp.ne.s32.totalorder %s82, %s85
      %p91 = scmp.eq.s32.totalorder %s20, 0
      %p92 = por %p90, %p91
      %p93 = scmp.ne.s32.totalorder %s82, %s85
      %p94 = scmp.eq.s32.totalorder %s25, 1
      %p95 = por %p93, %p94
      %p96 = scmp.ne.s32.totalorder %s85, %s86
      %p97 = scmp.eq.s32.totalorder %s25, 0
      %p98 = por %p96, %p97
      %p99 = scmp.ne.s32.totalorder %s85, %s86
      %p100 = scmp.eq.s32.totalorder %s26, 1
      %p101 = por %p99, %p100
      %p103 = scmp.ne.s32.totalorder %s86, %s102
      %p104 = scmp.eq.s32.totalorder %s26, 0
      %p105 = por %p103, %p104
      %s107 = sadd.s32 %s106, 1
      %p110 = scmp.eq.s32.totalorder %s20, 1
      %p111 = scmp.ne.s32.totalorder %s106, %s108
      %p112 = scmp.eq.s32.totalorder %s20, 0
      %p113 = por %p111, %p112
      %p114 = scmp.ne.s32.totalorder %s106, %s108
      %p115 = scmp.eq.s32.totalorder %s25, 1
      %p116 = por %p114, %p115
      %p117 = scmp.ne.s32.totalorder %s108, %s109
      %p118 = scmp.eq.s32.totalorder %s25, 0
      %p119 = por %p117, %p118
      %p120 = scmp.ne.s32.totalorder %s108, %s109
      %p121 = scmp.eq.s32.totalorder %s26, 1
      %p122 = por %p120, %p121
      %p124 = scmp.ne.s32.totalorder %s109, %s123
      %p125 = scmp.eq.s32.totalorder %s26, 0
      %p126 = por %p124, %p125
      %s128 = sadd.s32 %s127, 1
      %p131 = scmp.eq.s32.totalorder %s20, 1
      %p132 = scmp.ne.s32.totalorder %s127, %s129
      %p133 = scmp.eq.s32.totalorder %s20, 0
      %p134 = por %p132, %p133
      %p135 = scmp.ne.s32.totalorder %s127, %s129
      %p136 = scmp.eq.s32.totalorder %s25, 1
      %p137 = por %p135, %p136
      %p138 = scmp.ne.s32.totalorder %s129, %s130
      %p139 = scmp.eq.s32.totalorder %s25, 0
      %p140 = por %p138, %p139
      %p141 = scmp.ne.s32.totalorder %s129, %s130
      %p142 = scmp.eq.s32.totalorder %s26, 1
      %p143 = por %p141, %p142
      %p145 = scmp.ne.s32.totalorder %s130, %s144
      %p146 = scmp.eq.s32.totalorder %s26, 0
      %p147 = por %p145, %p146
      %s149 = sadd.s32 %s148, 1
      %p152 = scmp.eq.s32.totalorder %s20, 1
      %p153 = scmp.ne.s32.totalorder %s148, %s150
      %p154 = scmp.eq.s32.totalorder %s20, 0
      %p155 = por %p153, %p154
      %p156 = scmp.ne.s32.totalorder %s148, %s150
      %p157 = scmp.eq.s32.totalorder %s25, 1
      %p158 = por %p156, %p157
      %p159 = scmp.ne.s32.totalorder %s150, %s151
      %p160 = scmp.eq.s32.totalorder %s25, 0
      %p161 = por %p159, %p160
      %p162 = scmp.ne.s32.totalorder %s150, %s151
      %p163 = scmp.eq.s32.totalorder %s26, 1
      %p164 = por %p162, %p163
      %p166 = scmp.ne.s32.totalorder %s151, %s165
      %p167 = scmp.eq.s32.totalorder %s26, 0
      %p168 = por %p166, %p167
      %s170 = sadd.s32 %s169, 1
      %p173 = scmp.eq.s32.totalorder %s20, 1
      %p174 = scmp.ne.s32.totalorder %s169, %s171
      %p175 = scmp.eq.s32.totalorder %s20, 0
      %p176 = por %p174, %p175
      %p177 = scmp.ne.s32.totalorder %s169, %s171
      %p178 = scmp.eq.s32.totalorder %s25, 1
      %p179 = por %p177, %p178
      %p180 = scmp.ne.s32.totalorder %s171, %s172
      %p181 = scmp.eq.s32.totalorder %s25, 0
      %p182 = por %p180, %p181
      %p183 = scmp.ne.s32.totalorder %s171, %s172
      %p184 = scmp.eq.s32.totalorder %s26, 1
      %p185 = por %p183, %p184
      %p187 = scmp.ne.s32.totalorder %s172, %s186
      %p188 = scmp.eq.s32.totalorder %s26, 0
      %p189 = por %p187, %p188
      %s191 = sadd.s32 %s190, 1
      %p194 = scmp.eq.s32.totalorder %s20, 1
      %p195 = scmp.ne.s32.totalorder %s190, %s192
      %p196 = scmp.eq.s32.totalorder %s20, 0
      %p197 = por %p195, %p196
      %p198 = scmp.ne.s32.totalorder %s190, %s192
      %p199 = scmp.eq.s32.totalorder %s25, 1
      %p200 = por %p198, %p199
      %p201 = scmp.ne.s32.totalorder %s192, %s193
      %p202 = scmp.eq.s32.totalorder %s25, 0
      %p203 = por %p201, %p202
      %p204 = scmp.ne.s32.totalorder %s192, %s193
      %p205 = scmp.eq.s32.totalorder %s26, 1
      %p206 = por %p204, %p205
      %p208 = scmp.ne.s32.totalorder %s193, %s207
      %p209 = scmp.eq.s32.totalorder %s26, 0
      %p210 = por %p208, %p209
      %s212 = sadd.s32 %s211, 1
      %p215 = scmp.eq.s32.totalorder %s20, 1
      %p216 = scmp.ne.s32.totalorder %s211, %s213
      %p217 = scmp.eq.s32.totalorder %s20, 0
      %p218 = por %p216, %p217
      %p219 = scmp.ne.s32.totalorder %s211, %s213
      %p220 = scmp.eq.s32.totalorder %s25, 1
      %p221 = por %p219, %p220
      %p222 = scmp.ne.s32.totalorder %s213, %s214
      %p223 = scmp.eq.s32.totalorder %s25, 0
      %p224 = por %p222, %p223
      %p225 = scmp.ne.s32.totalorder %s213, %s214
      %p226 = scmp.eq.s32.totalorder %s26, 1
      %p227 = por %p225, %p226
      %p229 = scmp.ne.s32.totalorder %s214, %s228
      %p230 = scmp.eq.s32.totalorder %s26, 0
      %p231 = por %p229, %p230
      %s232 = ssub.s32 %s20, %s27
      %p233 = scmp.eq.s32.totalorder %s232, 0
      %s235 = sadd.s32 %s234, 1
      %s236 = scalar_select %p233, %s234, %s235
      %p239 = pneg %p233
      %p240 = scmp.eq.s32.totalorder %s20, 1
      %p241 = por %p239, %p240
      %p242 = scmp.ne.s32.totalorder %s234, %s237
      %p243 = scmp.eq.s32.totalorder %s20, 0
      %p244 = por %p242, %p243
      %p245 = scmp.ne.s32.totalorder %s234, %s237
      %p246 = scmp.eq.s32.totalorder %s25, 1
      %p247 = por %p245, %p246
      %p248 = scmp.ne.s32.totalorder %s237, %s238
      %p249 = scmp.eq.s32.totalorder %s25, 0
      %p250 = por %p248, %p249
      %p251 = scmp.ne.s32.totalorder %s237, %s238
      %p252 = scmp.eq.s32.totalorder %s26, 1
      %p253 = por %p251, %p252
      %p255 = scmp.ne.s32.totalorder %s238, %s254
      %p256 = scmp.eq.s32.totalorder %s26, 0
      %p257 = por %p255, %p256
      %p258 = scmp.le.s32.totalorder 1, %s20
      %p259 = scmp.lt.s32.totalorder %s20, 3
      %p260 = pnand %p258, %p259
      %p261 = pneg %p260
      // Predicated region
      $region9: #{tpu_custom_call.1} parent=5 // pred_check
        _
      $region10: #{tpu_custom_call.1} parent=5 // pred_check_branch
        %263 = sbr.rel (%p260) target = $region12
      $region11: #{tpu_custom_call.1} parent=5 // pred_region
        %s264 = ssub.s32 %s20, 1
        // Predicated region
        $region13: #{tpu_custom_call.1} parent=11 // pred_check
          %p265 = pneg %p119
        $region14: #{tpu_custom_call.1} parent=11 // pred_check_branch
          %267 = sbr.rel (%p265) target = $region16
        $region15: #{tpu_custom_call.1} parent=11 // pred_region
          _
        $region16: #{tpu_custom_call.1} parent=11 // pred_fallthru
          _
        // Predicated region
        $region17: #{tpu_custom_call.1} parent=11 // pred_check
          %p268 = pneg %p140
        $region18: #{tpu_custom_call.1} parent=11 // pred_check_branch
          %270 = sbr.rel (%p268) target = $region20
        $region19: #{tpu_custom_call.1} parent=11 // pred_region
          _
        $region20: #{tpu_custom_call.1} parent=11 // pred_fallthru
          _
        // Predicated region
        $region21: #{tpu_custom_call.1} parent=11 // pred_check
          %p271 = pneg %p161
        $region22: #{tpu_custom_call.1} parent=11 // pred_check_branch
          %273 = sbr.rel (%p271) target = $region24
        $region23: #{tpu_custom_call.1} parent=11 // pred_region
          _
        $region24: #{tpu_custom_call.1} parent=11 // pred_fallthru
          _
        // Predicated region
        $region25: #{tpu_custom_call.1} parent=11 // pred_check
          %p274 = pneg %p182
        $region26: #{tpu_custom_call.1} parent=11 // pred_check_branch
          %276 = sbr.rel (%p274) target = $region28
        $region27: #{tpu_custom_call.1} parent=11 // pred_region
          _
        $region28: #{tpu_custom_call.1} parent=11 // pred_fallthru
          _
        // Predicated region
        $region29: #{tpu_custom_call.1} parent=11 // pred_check
          %p277 = pneg %p203
        $region30: #{tpu_custom_call.1} parent=11 // pred_check_branch
          %279 = sbr.rel (%p277) target = $region32
        $region31: #{tpu_custom_call.1} parent=11 // pred_region
          _
        $region32: #{tpu_custom_call.1} parent=11 // pred_fallthru
          _
        // Predicated region
        $region33: #{tpu_custom_call.1} parent=11 // pred_check
          %p280 = pneg %p224
        $region34: #{tpu_custom_call.1} parent=11 // pred_check_branch
          %282 = sbr.rel (%p280) target = $region36
        $region35: #{tpu_custom_call.1} parent=11 // pred_region
          _
        $region36: #{tpu_custom_call.1} parent=11 // pred_fallthru
          _
      $region12: #{tpu_custom_call.1} parent=5 // pred_fallthru
        _
      %p283 = scmp.lt.s32.totalorder %s20, 2
      // Predicated region
      $region37: #{tpu_custom_call.1} parent=5 // pred_check
        %p284 = pneg %p283
      $region38: #{tpu_custom_call.1} parent=5 // pred_check_branch
        %286 = sbr.rel (%p284) target = $region40
      $region39: #{tpu_custom_call.1} parent=5 // pred_region
        // Predicated region
        $region41: #{tpu_custom_call.1} parent=39 // pred_check
          %p287 = pneg %p40
        $region42: #{tpu_custom_call.1} parent=39 // pred_check_branch
          %289 = sbr.rel (%p287) target = $region44
        $region43: #{tpu_custom_call.1} parent=39 // pred_region
          %s290 = smul.u32 4, %s20
          %p291 = scmp.lt.s32.totalorder %s290, 7
          %s292 = scalar_select %p291, %s290, 7
          %s293 = scalar_lea.vmem %s0, %s292
          %s294 = smul.u32 4, %s20
        $region44: #{tpu_custom_call.1} parent=39 // pred_fallthru
          _
        // Predicated region
        $region45: #{tpu_custom_call.1} parent=39 // pred_check
          %p295 = pneg %p66
        $region46: #{tpu_custom_call.1} parent=39 // pred_check_branch
          %297 = sbr.rel (%p295) target = $region48
        $region47: #{tpu_custom_call.1} parent=39 // pred_region
          %s298 = smul.u32 4, %s20
          %p299 = scmp.lt.s32.totalorder %s298, 7
          %s300 = scalar_select %p299, %s298, 7
          %s301 = scalar_lea.vmem %s1, %s300
          %s302 = smul.u32 4, %s20
        $region48: #{tpu_custom_call.1} parent=39 // pred_fallthru
          _
        // Predicated region
        $region49: #{tpu_custom_call.1} parent=39 // pred_check
          %p303 = pneg %p92
        $region50: #{tpu_custom_call.1} parent=39 // pred_check_branch
          %305 = sbr.rel (%p303) target = $region52
        $region51: #{tpu_custom_call.1} parent=39 // pred_region
          %s306 = smul.u32 4, %s20
          %p307 = scmp.lt.s32.totalorder %s306, 7
          %s308 = scalar_select %p307, %s306, 7
          %s309 = scalar_lea.vmem %s2, %s308
          %s310 = smul.u32 4, %s20
        $region52: #{tpu_custom_call.1} parent=39 // pred_fallthru
          _
      $region40: #{tpu_custom_call.1} parent=5 // pred_fallthru
        _
      %p311 = scmp.le.s32.totalorder 1, %s20
      %p312 = scmp.lt.s32.totalorder %s20, 3
      %p313 = pnand %p311, %p312
      %p314 = pneg %p313
      // Predicated region
      $region53: #{tpu_custom_call.1} parent=5 // pred_check
        _
      $region54: #{tpu_custom_call.1} parent=5 // pred_check_branch
        %316 = sbr.rel (%p313) target = $region56
      $region55: #{tpu_custom_call.1} parent=5 // pred_region
        %s317 = ssub.s32 %s20, 1
        %s318 = smul.u32 4, %s25
        %p319 = scmp.lt.s32.totalorder %s318, 7
        %s320 = scalar_select %p319, %s318, 7
        %s321 = scalar_lea.vmem %s0, %s320
        %p322 = pneg %p46
        %p323 = pneg %p43
        %s324 = smul.u32 4, %s25
        %p325 = scmp.lt.s32.totalorder %s324, 7
        %s326 = scalar_select %p325, %s324, 7
        %s327 = scalar_lea.vmem %s1, %s326
        %p328 = pneg %p72
        %p329 = pneg %p69
        %s330 = smul.u32 4, %s25
        %p331 = scmp.lt.s32.totalorder %s330, 7
        %s332 = scalar_select %p331, %s330, 7
        %s333 = scalar_lea.vmem %s2, %s332
        %p334 = pneg %p98
        %p335 = pneg %p95
        %p336 = pneg %p119
        %p337 = pneg %p116
        %p338 = pneg %p140
        %p339 = pneg %p137
        %p340 = pneg %p161
        %p341 = pneg %p158
        %p342 = pneg %p182
        %p343 = pneg %p179
        %p344 = pneg %p203
        %p345 = pneg %p200
        %p346 = pneg %p224
        %p347 = pneg %p221
        %p348 = pneg %p250
        %p349 = pneg %p247
        %s350 = sand.u32 %s237, 1
        %s351 = scalar_lea.sflag [#allocation4], %s350
        %s352 = sand.u32 %s237, 1
        %s353 = smul.addr %s352, 4
        %s354 = scalar_lea.vmem [#allocation3], %s353
        %s355 = smul.u32 4, %s25
        %p356 = scmp.lt.s32.totalorder %s355, 7
        %s357 = scalar_select %p356, %s355, 7
        %s358 = scalar_lea.vmem %s0, %s357
        %s359 = smul.u32 4, %s25
        %s360 = smul.u32 4, %s25
        %p361 = scmp.lt.s32.totalorder %s360, 7
        %s362 = scalar_select %p361, %s360, 7
        %s363 = scalar_lea.vmem %s1, %s362
        %s364 = smul.u32 4, %s25
        %s365 = smul.u32 4, %s25
        %p366 = scmp.lt.s32.totalorder %s365, 7
        %s367 = scalar_select %p366, %s365, 7
        %s368 = scalar_lea.vmem %s2, %s367
        %s369 = smul.u32 4, %s25
        %s370 = smul.u32 4, %s25
        %v372 = vld [vmem:[%s3] sm:$0xff]
        %v373 = vld [vmem:[%s3 + $0x8] sm:$0xff]
        %v374 = vld [vmem:[%s3 + $0x10] sm:$0xff]
        %v375 = vld [vmem:[%s3 + $0x18] sm:$0xff]
        %v376 = vld [vmem:[%s358] sm:$0xf]
        %378 = vset.pattern.permute.xlu0 0
        %379 = vperm.xlu0 %378, %v372
        %v380 = vpop.permute.xlu0 %379
        %383 = vset.pattern.permute.xlu0 0
        %384 = vperm.xlu0 %383, %v373
        %v385 = vpop.permute.xlu0 %384
        %388 = vset.pattern.permute.xlu0 0
        %389 = vperm.xlu0 %388, %v374
        %v390 = vpop.permute.xlu0 %389
        %393 = vset.pattern.permute.xlu0 0
        %394 = vperm.xlu0 %393, %v375
        %v395 = vpop.permute.xlu0 %394
        %v398 = vlaneseq
        %v399 = vshrl.u32 %v398, 7
        %v400 = vsub.s32 0, %v399
        %v401 = vrot.slane %v376, %v400
        %v402 = vlaneseq
        %v403 = vshrl.u32 %v402, 7
        %v404 = vsub.s32 1, %v403
        %v405 = vrot.slane %v376, %v404
        %v406 = vlaneseq
        %v407 = vshrl.u32 %v406, 7
        %v408 = vsub.s32 2, %v407
        %v409 = vrot.slane %v376, %v408
        %v410 = vlaneseq
        %v411 = vshrl.u32 %v410, 7
        %v412 = vsub.s32 3, %v411
        %v413 = vrot.slane %v376, %v412
        %v418 = vmul.f32 %v380, %v401
        %v419 = vmul.f32 %v380, %v405
        %v420 = vmul.f32 %v380, %v409
        %v421 = vmul.f32 %v380, %v413
        %v422 = vmul.f32 %v385, %v401
        %v423 = vmul.f32 %v385, %v405
        %v424 = vmul.f32 %v385, %v409
        %v425 = vmul.f32 %v385, %v413
        %v426 = vmul.f32 %v390, %v401
        %v427 = vmul.f32 %v390, %v405
        %v428 = vmul.f32 %v390, %v409
        %v429 = vmul.f32 %v390, %v413
        %v430 = vmul.f32 %v395, %v401
        %v431 = vmul.f32 %v395, %v405
        %v432 = vmul.f32 %v395, %v409
        %v433 = vmul.f32 %v395, %v413
        %v434 = vld [vmem:[%s363] sm:$0xf]
        %435 = vset.pattern.permute.xlu0 1
        %436 = vperm.xlu0 %435, %v372
        %v437 = vpop.permute.xlu0 %436
        %439 = vset.pattern.permute.xlu0 1
        %440 = vperm.xlu0 %439, %v373
        %v441 = vpop.permute.xlu0 %440
        %443 = vset.pattern.permute.xlu0 1
        %444 = vperm.xlu0 %443, %v374
        %v445 = vpop.permute.xlu0 %444
        %447 = vset.pattern.permute.xlu0 1
        %448 = vperm.xlu0 %447, %v375
        %v449 = vpop.permute.xlu0 %448
        %v452 = vlaneseq
        %v453 = vshrl.u32 %v452, 7
        %v454 = vsub.s32 0, %v453
        %v455 = vrot.slane %v434, %v454
        %v456 = vlaneseq
        %v457 = vshrl.u32 %v456, 7
        %v458 = vsub.s32 1, %v457
        %v459 = vrot.slane %v434, %v458
        %v460 = vlaneseq
        %v461 = vshrl.u32 %v460, 7
        %v462 = vsub.s32 2, %v461
        %v463 = vrot.slane %v434, %v462
        %v464 = vlaneseq
        %v465 = vshrl.u32 %v464, 7
        %v466 = vsub.s32 3, %v465
        %v467 = vrot.slane %v434, %v466
        %v472 = vmul.f32 %v437, %v455
        %v473 = vmul.f32 %v437, %v459
        %v474 = vmul.f32 %v437, %v463
        %v475 = vmul.f32 %v437, %v467
        %v476 = vmul.f32 %v441, %v455
        %v477 = vmul.f32 %v441, %v459
        %v478 = vmul.f32 %v441, %v463
        %v479 = vmul.f32 %v441, %v467
        %v480 = vmul.f32 %v445, %v455
        %v481 = vmul.f32 %v445, %v459
        %v482 = vmul.f32 %v445, %v463
        %v483 = vmul.f32 %v445, %v467
        %v484 = vmul.f32 %v449, %v455
        %v485 = vmul.f32 %v449, %v459
        %v486 = vmul.f32 %v449, %v463
        %v487 = vmul.f32 %v449, %v467
        %v488 = vadd.f32 %v418, %v472
        %v489 = vadd.f32 %v419, %v473
        %v490 = vadd.f32 %v420, %v474
        %v491 = vadd.f32 %v421, %v475
        %v492 = vadd.f32 %v422, %v476
        %v493 = vadd.f32 %v423, %v477
        %v494 = vadd.f32 %v424, %v478
        %v495 = vadd.f32 %v425, %v479
        %v496 = vadd.f32 %v426, %v480
        %v497 = vadd.f32 %v427, %v481
        %v498 = vadd.f32 %v428, %v482
        %v499 = vadd.f32 %v429, %v483
        %v500 = vadd.f32 %v430, %v484
        %v501 = vadd.f32 %v431, %v485
        %v502 = vadd.f32 %v432, %v486
        %v503 = vadd.f32 %v433, %v487
        %v504 = vld [vmem:[%s368] sm:$0xf]
        %505 = vset.pattern.permute.xlu0 2
        %506 = vperm.xlu0 %505, %v372
        %v507 = vpop.permute.xlu0 %506
        %509 = vset.pattern.permute.xlu0 2
        %510 = vperm.xlu0 %509, %v373
        %v511 = vpop.permute.xlu0 %510
        %513 = vset.pattern.permute.xlu0 2
        %514 = vperm.xlu0 %513, %v374
        %v515 = vpop.permute.xlu0 %514
        %517 = vset.pattern.permute.xlu0 2
        %518 = vperm.xlu0 %517, %v375
        %v519 = vpop.permute.xlu0 %518
        %v522 = vlaneseq
        %v523 = vshrl.u32 %v522, 7
        %v524 = vsub.s32 0, %v523
        %v525 = vrot.slane %v504, %v524
        %v526 = vlaneseq
        %v527 = vshrl.u32 %v526, 7
        %v528 = vsub.s32 1, %v527
        %v529 = vrot.slane %v504, %v528
        %v530 = vlaneseq
        %v531 = vshrl.u32 %v530, 7
        %v532 = vsub.s32 2, %v531
        %v533 = vrot.slane %v504, %v532
        %v534 = vlaneseq
        %v535 = vshrl.u32 %v534, 7
        %v536 = vsub.s32 3, %v535
        %v537 = vrot.slane %v504, %v536
        %v542 = vmul.f32 %v507, %v525
        %v543 = vmul.f32 %v507, %v529
        %v544 = vmul.f32 %v507, %v533
        %v545 = vmul.f32 %v507, %v537
        %v546 = vmul.f32 %v511, %v525
        %v547 = vmul.f32 %v511, %v529
        %v548 = vmul.f32 %v511, %v533
        %v549 = vmul.f32 %v511, %v537
        %v550 = vmul.f32 %v515, %v525
        %v551 = vmul.f32 %v515, %v529
        %v552 = vmul.f32 %v515, %v533
        %v553 = vmul.f32 %v515, %v537
        %v554 = vmul.f32 %v519, %v525
        %v555 = vmul.f32 %v519, %v529
        %v556 = vmul.f32 %v519, %v533
        %v557 = vmul.f32 %v519, %v537
        %v558 = vadd.f32 %v488, %v542
        %v559 = vadd.f32 %v489, %v543
        %v560 = vadd.f32 %v490, %v544
        %v561 = vadd.f32 %v491, %v545
        %v562 = vadd.f32 %v492, %v546
        %v563 = vadd.f32 %v493, %v547
        %v564 = vadd.f32 %v494, %v548
        %v565 = vadd.f32 %v495, %v549
        %v566 = vadd.f32 %v496, %v550
        %v567 = vadd.f32 %v497, %v551
        %v568 = vadd.f32 %v498, %v552
        %v569 = vadd.f32 %v499, %v553
        %v570 = vadd.f32 %v500, %v554
        %v571 = vadd.f32 %v501, %v555
        %v572 = vadd.f32 %v502, %v556
        %v573 = vadd.f32 %v503, %v557
        %v574 = vld [vmem:[%s4] sm:$0xff]
        %v575 = vld [vmem:[%s4 + $0x8] sm:$0xff]
        %v576 = vld [vmem:[%s4 + $0x10] sm:$0xff]
        %v577 = vld [vmem:[%s4 + $0x18] sm:$0xff]
        %579 = vset.pattern.permute.xlu0 0
        %580 = vperm.xlu0 %579, %v574
        %v581 = vpop.permute.xlu0 %580
        %584 = vset.pattern.permute.xlu0 0
        %585 = vperm.xlu0 %584, %v575
        %v586 = vpop.permute.xlu0 %585
        %589 = vset.pattern.permute.xlu0 0
        %590 = vperm.xlu0 %589, %v576
        %v591 = vpop.permute.xlu0 %590
        %594 = vset.pattern.permute.xlu0 0
        %595 = vperm.xlu0 %594, %v577
        %v596 = vpop.permute.xlu0 %595
        %v598 = vadd.f32 %v558, %v581
        %v599 = vadd.f32 %v559, %v581
        %v600 = vadd.f32 %v560, %v581
        %v601 = vadd.f32 %v561, %v581
        %v602 = vadd.f32 %v562, %v586
        %v603 = vadd.f32 %v563, %v586
        %v604 = vadd.f32 %v564, %v586
        %v605 = vadd.f32 %v565, %v586
        %v606 = vadd.f32 %v566, %v591
        %v607 = vadd.f32 %v567, %v591
        %v608 = vadd.f32 %v568, %v591
        %v609 = vadd.f32 %v569, %v591
        %v610 = vadd.f32 %v570, %v596
        %v611 = vadd.f32 %v571, %v596
        %v612 = vadd.f32 %v572, %v596
        %v613 = vadd.f32 %v573, %v596
        %v614 = vmax.f32 %v598, 0.0
        %v615 = vmax.f32 %v599, 0.0
        %v616 = vmax.f32 %v600, 0.0
        %v617 = vmax.f32 %v601, 0.0
        %v618 = vmax.f32 %v602, 0.0
        %v619 = vmax.f32 %v603, 0.0
        %v620 = vmax.f32 %v604, 0.0
        %v621 = vmax.f32 %v605, 0.0
        %v622 = vmax.f32 %v606, 0.0
        %v623 = vmax.f32 %v607, 0.0
        %v624 = vmax.f32 %v608, 0.0
        %v625 = vmax.f32 %v609, 0.0
        %v626 = vmax.f32 %v610, 0.0
        %v627 = vmax.f32 %v611, 0.0
        %v628 = vmax.f32 %v612, 0.0
        %v629 = vmax.f32 %v613, 0.0
        %v630 = vld [vmem:[%s5] sm:$0xf]
        %v631 = vld [vmem:[%s5 + $0x4] sm:$0xf]
        %v632 = vld [vmem:[%s5 + $0x8] sm:$0xf]
        %v633 = vld [vmem:[%s5 + $0xc] sm:$0xf]
        %v634 = vpack.c.bf16 %v618, %v614
        %v635 = vpack.c.bf16 %v619, %v615
        %v636 = vpack.c.bf16 %v620, %v616
        %v637 = vpack.c.bf16 %v621, %v617
        %v638 = vpack.c.bf16 %v626, %v622
        %v639 = vpack.c.bf16 %v627, %v623
        %v640 = vpack.c.bf16 %v628, %v624
        %v641 = vpack.c.bf16 %v629, %v625
        %v642 = vld [vmem:[%s6] sm:$0xff]
        %v643 = vld [vmem:[%s6 + $0x8] sm:$0xff]
        %v644 = vld [vmem:[%s6 + $0x10] sm:$0xff]
        %v645 = vld [vmem:[%s6 + $0x18] sm:$0xff]
        %647 = vset.pattern.permute.xlu0 0
        %648 = vperm.xlu0 %647, %v642
        %v649 = vpop.permute.xlu0 %648
        %652 = vset.pattern.permute.xlu0 0
        %653 = vperm.xlu0 %652, %v643
        %v654 = vpop.permute.xlu0 %653
        %657 = vset.pattern.permute.xlu0 0
        %658 = vperm.xlu0 %657, %v644
        %v659 = vpop.permute.xlu0 %658
        %662 = vset.pattern.permute.xlu0 0
        %663 = vperm.xlu0 %662, %v645
        %v664 = vpop.permute.xlu0 %663
        %v670 = vunpack.c.l.b16 %v630
        %v671 = vunpack.c.l.b16 %v631
        %v672 = vunpack.c.l.b16 %v632
        %v673 = vunpack.c.l.b16 %v633
        %v674 = vpack.c.b16 %v671, %v670
        %v675 = vpack.c.b16 %v673, %v672
        %vm676 = vcmask 261120
        %v678 = vsel %vm676, %v674, 0
        %v681 = vsel %vm676, %v675, 0
        %683 = vmatprep.subr.bf16.mxu0 0
        %684 = vmatpush1.bf16.msra.mxu0 0
        %685 = vmatprep.subr.bf16.mxu0 0
        %686 = vmatpush1.bf16.msra.mxu0 0
        %687 = vmatprep.subr.bf16.mxu0 0
        %688 = vmatpush1.bf16.msra.mxu0 0
        %689 = vmatprep.subr.bf16.mxu0 0
        %690 = vmatpush1.bf16.msra.mxu0 0
        %691 = vmatprep.subr.bf16.mxu0 0
        %692 = vmatpush1.bf16.msra.mxu0 0
        %693 = vmatprep.subr.bf16.mxu0 0
        %694 = vmatpush1.bf16.msra.mxu0 0
        %695 = vmatprep.subr.bf16.mxu0 %v639
        %696 = vmatpush1.bf16.msra.mxu0 %v638
        %697 = vmatprep.subr.bf16.mxu0 %v635
        %698 = vmatpush1.bf16.msra.mxu0 %v634
        %699 = vmatprep.subr.bf16.mxu0 0
        %700 = vmatpush2.bf16.msra.mxu0 0
        %701 = vmatprep.subr.bf16.mxu0 0
        %702 = vmatpush2.bf16.msra.mxu0 0
        %703 = vmatprep.subr.bf16.mxu0 0
        %704 = vmatpush2.bf16.msra.mxu0 0
        %705 = vmatprep.subr.bf16.mxu0 0
        %706 = vmatpush2.bf16.msra.mxu0 0
        %707 = vmatprep.subr.bf16.mxu0 0
        %708 = vmatpush2.bf16.msra.mxu0 0
        %709 = vmatprep.subr.bf16.mxu0 0
        %710 = vmatpush2.bf16.msra.mxu0 0
        %711 = vmatprep.subr.bf16.mxu0 0
        %712 = vmatpush2.bf16.msra.mxu0 0
        %713 = vmatprep.subr.bf16.mxu0 0
        %714 = vmatpush2.bf16.msra.mxu0 0
        %715 = vmatprep.mubr.bf16.mxu0 0
        %716 = vmatmul.mubr.bf16.gmra.mxu0 %v678
        %v717 = vpop.f32.mrf.mxu0
        %v718 = vadd.f32 %v649, %v717
        %v719 = vpop.f32.mrf.mxu0
        %v720 = vadd.f32 %v649, %v719
        %v721 = vpop.f32.mrf.mxu0
        %v722 = vadd.f32 %v654, %v721
        %v723 = vpop.f32.mrf.mxu0
        %v724 = vadd.f32 %v654, %v723
        %725 = vmatprep.mubr.bf16.mxu0 0
        %726 = vmatmul.mubr.bf16.gmra.mxu0 %v681
        %v727 = vpop.f32.mrf.mxu0
        %v728 = vadd.f32 %v659, %v727
        %v729 = vpop.f32.mrf.mxu0
        %v730 = vadd.f32 %v659, %v729
        %v731 = vpop.f32.mrf.mxu0
        %v732 = vadd.f32 %v664, %v731
        %v733 = vpop.f32.mrf.mxu0
        %v734 = vadd.f32 %v664, %v733
        %735 = vdwg.mxu0
        %736 = vmatprep.subr.bf16.mxu0 0
        %737 = vmatpush1.bf16.msra.mxu0 0
        %738 = vmatprep.subr.bf16.mxu0 0
        %739 = vmatpush1.bf16.msra.mxu0 0
        %740 = vmatprep.subr.bf16.mxu0 0
        %741 = vmatpush1.bf16.msra.mxu0 0
        %742 = vmatprep.subr.bf16.mxu0 0
        %743 = vmatpush1.bf16.msra.mxu0 0
        %744 = vmatprep.subr.bf16.mxu0 0
        %745 = vmatpush1.bf16.msra.mxu0 0
        %746 = vmatprep.subr.bf16.mxu0 0
        %747 = vmatpush1.bf16.msra.mxu0 0
        %748 = vmatprep.subr.bf16.mxu0 %v641
        %749 = vmatpush1.bf16.msra.mxu0 %v640
        %750 = vmatprep.subr.bf16.mxu0 %v637
        %751 = vmatpush1.bf16.msra.mxu0 %v636
        %752 = vmatprep.subr.bf16.mxu0 0
        %753 = vmatpush2.bf16.msra.mxu0 0
        %754 = vmatprep.subr.bf16.mxu0 0
        %755 = vmatpush2.bf16.msra.mxu0 0
        %756 = vmatprep.subr.bf16.mxu0 0
        %757 = vmatpush2.bf16.msra.mxu0 0
        %758 = vmatprep.subr.bf16.mxu0 0
        %759 = vmatpush2.bf16.msra.mxu0 0
        %760 = vmatprep.subr.bf16.mxu0 0
        %761 = vmatpush2.bf16.msra.mxu0 0
        %762 = vmatprep.subr.bf16.mxu0 0
        %763 = vmatpush2.bf16.msra.mxu0 0
        %764 = vmatprep.subr.bf16.mxu0 0
        %765 = vmatpush2.bf16.msra.mxu0 0
        %766 = vmatprep.subr.bf16.mxu0 0
        %767 = vmatpush2.bf16.msra.mxu0 0
        %768 = vmatprep.mubr.bf16.mxu0 0
        %769 = vmatmul.mubr.bf16.gmra.mxu0 %v678
        %v770 = vpop.f32.mrf.mxu0
        %v771 = vadd.f32 %v649, %v770
        %v772 = vpop.f32.mrf.mxu0
        %v773 = vadd.f32 %v649, %v772
        %v774 = vpop.f32.mrf.mxu0
        %v775 = vadd.f32 %v654, %v774
        %v776 = vpop.f32.mrf.mxu0
        %v777 = vadd.f32 %v654, %v776
        %778 = vmatprep.mubr.bf16.mxu0 0
        %779 = vmatmul.mubr.bf16.gmra.mxu0 %v681
        %v780 = vpop.f32.mrf.mxu0
        %v781 = vadd.f32 %v659, %v780
        %v782 = vpop.f32.mrf.mxu0
        %v783 = vadd.f32 %v659, %v782
        %v784 = vpop.f32.mrf.mxu0
        %v785 = vadd.f32 %v664, %v784
        %v786 = vpop.f32.mrf.mxu0
        %v787 = vadd.f32 %v664, %v786
        %788 = vdwg.mxu0
        %v789 = vmax.f32 %v718, 0.0
        %v790 = vmax.f32 %v720, 0.0
        %v791 = vmax.f32 %v771, 0.0
        %v792 = vmax.f32 %v773, 0.0
        %v793 = vmax.f32 %v722, 0.0
        %v794 = vmax.f32 %v724, 0.0
        %v795 = vmax.f32 %v775, 0.0
        %v796 = vmax.f32 %v777, 0.0
        %v797 = vmax.f32 %v728, 0.0
        %v798 = vmax.f32 %v730, 0.0
        %v799 = vmax.f32 %v781, 0.0
        %v800 = vmax.f32 %v783, 0.0
        %v801 = vmax.f32 %v732, 0.0
        %v802 = vmax.f32 %v734, 0.0
        %v803 = vmax.f32 %v785, 0.0
        %v804 = vmax.f32 %v787, 0.0
        %s805 = scalar_lea.vmem %s5, 16
        %v806 = vld [vmem:[%s805] sm:$0xf]
        %v807 = vld [vmem:[%s805 + $0x4] sm:$0xf]
        %v808 = vld [vmem:[%s805 + $0x8] sm:$0xf]
        %v809 = vld [vmem:[%s805 + $0xc] sm:$0xf]
        %v810 = vpack.c.bf16 %v793, %v789
        %v811 = vpack.c.bf16 %v794, %v790
        %v812 = vpack.c.bf16 %v795, %v791
        %v813 = vpack.c.bf16 %v796, %v792
        %v814 = vpack.c.bf16 %v801, %v797
        %v815 = vpack.c.bf16 %v802, %v798
        %v816 = vpack.c.bf16 %v803, %v799
        %v817 = vpack.c.bf16 %v804, %v800
        %s818 = scalar_lea.vmem %s6, 32
        %v819 = vld [vmem:[%s818] sm:$0xff]
        %v820 = vld [vmem:[%s818 + $0x8] sm:$0xff]
        %v821 = vld [vmem:[%s818 + $0x10] sm:$0xff]
        %v822 = vld [vmem:[%s818 + $0x18] sm:$0xff]
        %824 = vset.pattern.permute.xlu0 0
        %825 = vperm.xlu0 %824, %v819
        %v826 = vpop.permute.xlu0 %825
        %829 = vset.pattern.permute.xlu0 0
        %830 = vperm.xlu0 %829, %v820
        %v831 = vpop.permute.xlu0 %830
        %834 = vset.pattern.permute.xlu0 0
        %835 = vperm.xlu0 %834, %v821
        %v836 = vpop.permute.xlu0 %835
        %839 = vset.pattern.permute.xlu0 0
        %840 = vperm.xlu0 %839, %v822
        %v841 = vpop.permute.xlu0 %840
        %v847 = vunpack.c.l.b16 %v806
        %v848 = vunpack.c.l.b16 %v807
        %v849 = vunpack.c.l.b16 %v808
        %v850 = vunpack.c.l.b16 %v809
        %v851 = vpack.c.b16 %v848, %v847
        %v852 = vpack.c.b16 %v850, %v849
        %v854 = vsel %vm676, %v851, 0
        %v857 = vsel %vm676, %v852, 0
        %859 = vmatprep.subr.bf16.mxu0 0
        %860 = vmatpush1.bf16.msra.mxu0 0
        %861 = vmatprep.subr.bf16.mxu0 0
        %862 = vmatpush1.bf16.msra.mxu0 0
        %863 = vmatprep.subr.bf16.mxu0 0
        %864 = vmatpush1.bf16.msra.mxu0 0
        %865 = vmatprep.subr.bf16.mxu0 0
        %866 = vmatpush1.bf16.msra.mxu0 0
        %867 = vmatprep.subr.bf16.mxu0 0
        %868 = vmatpush1.bf16.msra.mxu0 0
        %869 = vmatprep.subr.bf16.mxu0 0
        %870 = vmatpush1.bf16.msra.mxu0 0
        %871 = vmatprep.subr.bf16.mxu0 %v815
        %872 = vmatpush1.bf16.msra.mxu0 %v814
        %873 = vmatprep.subr.bf16.mxu0 %v811
        %874 = vmatpush1.bf16.msra.mxu0 %v810
        %875 = vmatprep.subr.bf16.mxu0 0
        %876 = vmatpush2.bf16.msra.mxu0 0
        %877 = vmatprep.subr.bf16.mxu0 0
        %878 = vmatpush2.bf16.msra.mxu0 0
        %879 = vmatprep.subr.bf16.mxu0 0
        %880 = vmatpush2.bf16.msra.mxu0 0
        %881 = vmatprep.subr.bf16.mxu0 0
        %882 = vmatpush2.bf16.msra.mxu0 0
        %883 = vmatprep.subr.bf16.mxu0 0
        %884 = vmatpush2.bf16.msra.mxu0 0
        %885 = vmatprep.subr.bf16.mxu0 0
        %886 = vmatpush2.bf16.msra.mxu0 0
        %887 = vmatprep.subr.bf16.mxu0 0
        %888 = vmatpush2.bf16.msra.mxu0 0
        %889 = vmatprep.subr.bf16.mxu0 0
        %890 = vmatpush2.bf16.msra.mxu0 0
        %891 = vmatprep.mubr.bf16.mxu0 0
        %892 = vmatmul.mubr.bf16.gmra.mxu0 %v854
        %v893 = vpop.f32.mrf.mxu0
        %v894 = vadd.f32 %v826, %v893
        %v895 = vpop.f32.mrf.mxu0
        %v896 = vadd.f32 %v826, %v895
        %v897 = vpop.f32.mrf.mxu0
        %v898 = vadd.f32 %v831, %v897
        %v899 = vpop.f32.mrf.mxu0
        %v900 = vadd.f32 %v831, %v899
        %901 = vmatprep.mubr.bf16.mxu0 0
        %902 = vmatmul.mubr.bf16.gmra.mxu0 %v857
        %v903 = vpop.f32.mrf.mxu0
        %v904 = vadd.f32 %v836, %v903
        %v905 = vpop.f32.mrf.mxu0
        %v906 = vadd.f32 %v836, %v905
        %v907 = vpop.f32.mrf.mxu0
        %v908 = vadd.f32 %v841, %v907
        %v909 = vpop.f32.mrf.mxu0
        %v910 = vadd.f32 %v841, %v909
        %911 = vdwg.mxu0
        %912 = vmatprep.subr.bf16.mxu0 0
        %913 = vmatpush1.bf16.msra.mxu0 0
        %914 = vmatprep.subr.bf16.mxu0 0
        %915 = vmatpush1.bf16.msra.mxu0 0
        %916 = vmatprep.subr.bf16.mxu0 0
        %917 = vmatpush1.bf16.msra.mxu0 0
        %918 = vmatprep.subr.bf16.mxu0 0
        %919 = vmatpush1.bf16.msra.mxu0 0
        %920 = vmatprep.subr.bf16.mxu0 0
        %921 = vmatpush1.bf16.msra.mxu0 0
        %922 = vmatprep.subr.bf16.mxu0 0
        %923 = vmatpush1.bf16.msra.mxu0 0
        %924 = vmatprep.subr.bf16.mxu0 %v817
        %925 = vmatpush1.bf16.msra.mxu0 %v816
        %926 = vmatprep.subr.bf16.mxu0 %v813
        %927 = vmatpush1.bf16.msra.mxu0 %v812
        %928 = vmatprep.subr.bf16.mxu0 0
        %929 = vmatpush2.bf16.msra.mxu0 0
        %930 = vmatprep.subr.bf16.mxu0 0
        %931 = vmatpush2.bf16.msra.mxu0 0
        %932 = vmatprep.subr.bf16.mxu0 0
        %933 = vmatpush2.bf16.msra.mxu0 0
        %934 = vmatprep.subr.bf16.mxu0 0
        %935 = vmatpush2.bf16.msra.mxu0 0
        %936 = vmatprep.subr.bf16.mxu0 0
        %937 = vmatpush2.bf16.msra.mxu0 0
        %938 = vmatprep.subr.bf16.mxu0 0
        %939 = vmatpush2.bf16.msra.mxu0 0
        %940 = vmatprep.subr.bf16.mxu0 0
        %941 = vmatpush2.bf16.msra.mxu0 0
        %942 = vmatprep.subr.bf16.mxu0 0
        %943 = vmatpush2.bf16.msra.mxu0 0
        %944 = vmatprep.mubr.bf16.mxu0 0
        %945 = vmatmul.mubr.bf16.gmra.mxu0 %v854
        %v946 = vpop.f32.mrf.mxu0
        %v947 = vadd.f32 %v826, %v946
        %v948 = vpop.f32.mrf.mxu0
        %v949 = vadd.f32 %v826, %v948
        %v950 = vpop.f32.mrf.mxu0
        %v951 = vadd.f32 %v831, %v950
        %v952 = vpop.f32.mrf.mxu0
        %v953 = vadd.f32 %v831, %v952
        %954 = vmatprep.mubr.bf16.mxu0 0
        %955 = vmatmul.mubr.bf16.gmra.mxu0 %v857
        %v956 = vpop.f32.mrf.mxu0
        %v957 = vadd.f32 %v836, %v956
        %v958 = vpop.f32.mrf.mxu0
        %v959 = vadd.f32 %v836, %v958
        %v960 = vpop.f32.mrf.mxu0
        %v961 = vadd.f32 %v841, %v960
        %v962 = vpop.f32.mrf.mxu0
        %v963 = vadd.f32 %v841, %v962
        %964 = vdwg.mxu0
        %v965 = vmax.f32 %v894, 0.0
        %v966 = vmax.f32 %v896, 0.0
        %v967 = vmax.f32 %v947, 0.0
        %v968 = vmax.f32 %v949, 0.0
        %v969 = vmax.f32 %v898, 0.0
        %v970 = vmax.f32 %v900, 0.0
        %v971 = vmax.f32 %v951, 0.0
        %v972 = vmax.f32 %v953, 0.0
        %v973 = vmax.f32 %v904, 0.0
        %v974 = vmax.f32 %v906, 0.0
        %v975 = vmax.f32 %v957, 0.0
        %v976 = vmax.f32 %v959, 0.0
        %v977 = vmax.f32 %v908, 0.0
        %v978 = vmax.f32 %v910, 0.0
        %v979 = vmax.f32 %v961, 0.0
        %v980 = vmax.f32 %v963, 0.0
        %v981 = vld [vmem:[%s7] sm:$0x1]
        %v982 = vpack.c.bf16 %v969, %v965
        %v983 = vpack.c.bf16 %v970, %v966
        %v984 = vpack.c.bf16 %v971, %v967
        %v985 = vpack.c.bf16 %v972, %v968
        %v986 = vpack.c.bf16 %v977, %v973
        %v987 = vpack.c.bf16 %v978, %v974
        %v988 = vpack.c.bf16 %v979, %v975
        %v989 = vpack.c.bf16 %v980, %v976
        %v990 = vld [vmem:[#allocation2] sm:$0x1]
        %992 = vset.pattern.permute.xlu0 0
        %993 = vperm.xlu0 %992, %v990
        %v994 = vpop.permute.xlu0 %993
        %v996 = vlaneseq
        %v997 = vshrl.u32 %v996, 7
        %v998 = vsub.s32 0, %v997
        %v999 = vrot.slane %v994, %v998
        %v1001 = vsel %vm676, %v981, 0
        %1003 = vmatprep.subr.bf16.mxu0 0
        %1004 = vmatpush1.bf16.msra.mxu0 0
        %1005 = vmatprep.subr.bf16.mxu0 0
        %1006 = vmatpush1.bf16.msra.mxu0 0
        %1007 = vmatprep.subr.bf16.mxu0 0
        %1008 = vmatpush1.bf16.msra.mxu0 0
        %1009 = vmatprep.subr.bf16.mxu0 0
        %1010 = vmatpush1.bf16.msra.mxu0 0
        %1011 = vmatprep.subr.bf16.mxu0 0
        %1012 = vmatpush1.bf16.msra.mxu0 0
        %1013 = vmatprep.subr.bf16.mxu0 0
        %1014 = vmatpush1.bf16.msra.mxu0 0
        %1015 = vmatprep.subr.bf16.mxu0 %v987
        %1016 = vmatpush1.bf16.msra.mxu0 %v986
        %1017 = vmatprep.subr.bf16.mxu0 %v983
        %1018 = vmatpush1.bf16.msra.mxu0 %v982
        %1019 = vmatprep.subr.bf16.mxu0 0
        %1020 = vmatpush2.bf16.msra.mxu0 0
        %1021 = vmatprep.subr.bf16.mxu0 0
        %1022 = vmatpush2.bf16.msra.mxu0 0
        %1023 = vmatprep.subr.bf16.mxu0 0
        %1024 = vmatpush2.bf16.msra.mxu0 0
        %1025 = vmatprep.subr.bf16.mxu0 0
        %1026 = vmatpush2.bf16.msra.mxu0 0
        %1027 = vmatprep.subr.bf16.mxu0 0
        %1028 = vmatpush2.bf16.msra.mxu0 0
        %1029 = vmatprep.subr.bf16.mxu0 0
        %1030 = vmatpush2.bf16.msra.mxu0 0
        %1031 = vmatprep.subr.bf16.mxu0 0
        %1032 = vmatpush2.bf16.msra.mxu0 0
        %1033 = vmatprep.subr.bf16.mxu0 0
        %1034 = vmatpush2.bf16.msra.mxu0 0
        %1035 = vmatprep.mubr.bf16.mxu0 0
        %1036 = vmatmul.mubr.bf16.gmra.mxu0 %v1001
        %v1037 = vpop.f32.mrf.mxu0
        %v1038 = vadd.f32 %v999, %v1037
        %v1039 = vpop.f32.mrf.mxu0
        %v1040 = vadd.f32 %v999, %v1039
        %v1041 = vpop.f32.mrf.mxu0
        %v1042 = vpop.f32.mrf.mxu0
        %1043 = vdwg.mxu0
        %1044 = vmatprep.subr.bf16.mxu0 0
        %1045 = vmatpush1.bf16.msra.mxu0 0
        %1046 = vmatprep.subr.bf16.mxu0 0
        %1047 = vmatpush1.bf16.msra.mxu0 0
        %1048 = vmatprep.subr.bf16.mxu0 0
        %1049 = vmatpush1.bf16.msra.mxu0 0
        %1050 = vmatprep.subr.bf16.mxu0 0
        %1051 = vmatpush1.bf16.msra.mxu0 0
        %1052 = vmatprep.subr.bf16.mxu0 0
        %1053 = vmatpush1.bf16.msra.mxu0 0
        %1054 = vmatprep.subr.bf16.mxu0 0
        %1055 = vmatpush1.bf16.msra.mxu0 0
        %1056 = vmatprep.subr.bf16.mxu0 %v989
        %1057 = vmatpush1.bf16.msra.mxu0 %v988
        %1058 = vmatprep.subr.bf16.mxu0 %v985
        %1059 = vmatpush1.bf16.msra.mxu0 %v984
        %1060 = vmatprep.subr.bf16.mxu0 0
        %1061 = vmatpush2.bf16.msra.mxu0 0
        %1062 = vmatprep.subr.bf16.mxu0 0
        %1063 = vmatpush2.bf16.msra.mxu0 0
        %1064 = vmatprep.subr.bf16.mxu0 0
        %1065 = vmatpush2.bf16.msra.mxu0 0
        %1066 = vmatprep.subr.bf16.mxu0 0
        %1067 = vmatpush2.bf16.msra.mxu0 0
        %1068 = vmatprep.subr.bf16.mxu0 0
        %1069 = vmatpush2.bf16.msra.mxu0 0
        %1070 = vmatprep.subr.bf16.mxu0 0
        %1071 = vmatpush2.bf16.msra.mxu0 0
        %1072 = vmatprep.subr.bf16.mxu0 0
        %1073 = vmatpush2.bf16.msra.mxu0 0
        %1074 = vmatprep.subr.bf16.mxu0 0
        %1075 = vmatpush2.bf16.msra.mxu0 0
        %1076 = vmatprep.mubr.bf16.mxu0 0
        %1077 = vmatmul.mubr.bf16.gmra.mxu0 %v1001
        %v1078 = vpop.f32.mrf.mxu0
        %v1079 = vadd.f32 %v999, %v1078
        %v1080 = vpop.f32.mrf.mxu0
        %v1081 = vadd.f32 %v999, %v1080
        %v1082 = vpop.f32.mrf.mxu0
        %v1083 = vpop.f32.mrf.mxu0
        %1084 = vdwg.mxu0
        %v1089 = vcombine.low %v1038, %v1040
        %v1090 = vcombine.low %v1079, %v1081
        %v1092 = vunpack.c.l.s4 1966171168
        %v1093 = vunpack.c.0.s8 %v1092
        %v1094 = vlaneseq
        %v1095 = vshrl.u32 %v1094, 7
        %v1096 = vsub.s32 %v1093, %v1095
        %v1097 = vrot.slane %v1089, %v1096
        %v1099 = vunpack.c.l.s4 1966171168
        %v1100 = vunpack.c.0.s8 %v1099
        %v1101 = vlaneseq
        %v1102 = vshrl.u32 %v1101, 7
        %v1103 = vsub.s32 %v1100, %v1102
        %v1104 = vrot.slane %v1090, %v1103
        %v1105 = vcombine.low %v1097, %v1104
        %v1107 = vunpack.c.l.s4 1966171168
        %v1108 = vunpack.c.0.s8 %v1107
        %v1109 = vlaneseq
        %v1110 = vshrl.u32 %v1109, 7
        %v1111 = vsub.s32 %v1108, %v1110
        %v1112 = vrot.slane %v1105, %v1111
        %v1114 = vlaneseq
        %vm1115 = vcmp.ge.s32.totalorder %v1114, 0
        %vm1116 = vcmp.lt.s32.totalorder %v1114, 512
        %vm1117 = vmand %vm1115, %vm1116
        %1118 = vst.msk [vmem:[%s354] sm:$0xf] %vm1117, %v1112
        %s1119 = sand.u32 %s237, 1
        %s1120 = scalar_lea.sflag [#allocation4], %s1119
        %s1121 = sand.u32 %s237, 1
        %s1122 = smul.addr %s1121, 4
        %s1123 = scalar_lea.vmem [#allocation3], %s1122
        // Predicated region
        $region57: #{tpu_custom_call.1} parent=55 // pred_check
          %p1124 = pneg %p247
        $region58: #{tpu_custom_call.1} parent=55 // pred_check_branch
          %1126 = sbr.rel (%p1124) target = $region60
        $region59: #{tpu_custom_call.1} parent=55 // pred_region
          %s1127 = smul.u32 4, %s25
          %s1129 = ssub.s32 64, 64
          %1130 = vsyncadd %s1120, %s1129
          %s1131 = smul.addr %s1127, 16
          %s1132 = scalar_lea.hbm %s9, %s1131
          %s1134 = sshll.u32 %s1123, 4
          %s1135 = int_to_ptr.vmem [resolvable:$true] %s1134
          %1137 = dma.vmem_to_hbm [thread:$0]  %s1135, 64, %s1132, %s1120
        $region60: #{tpu_custom_call.1} parent=55 // pred_fallthru
          _
      $region56: #{tpu_custom_call.1} parent=5 // pred_fallthru
        _
      %p1138 = scmp.le.s32.totalorder 2, %s20
      // Predicated region
      $region61: #{tpu_custom_call.1} parent=5 // pred_check
        %p1139 = pneg %p1138
      $region62: #{tpu_custom_call.1} parent=5 // pred_check_branch
        %1141 = sbr.rel (%p1139) target = $region64
      $region63: #{tpu_custom_call.1} parent=5 // pred_region
        %s1142 = ssub.s32 %s20, 2
        // Predicated region
        $region65: #{tpu_custom_call.1} parent=63 // pred_check
          %p1143 = pneg %p253
        $region66: #{tpu_custom_call.1} parent=63 // pred_check_branch
          %1145 = sbr.rel (%p1143) target = $region68
        $region67: #{tpu_custom_call.1} parent=63 // pred_region
          %s1146 = sand.u32 %s238, 1
          %s1147 = scalar_lea.sflag [#allocation4], %s1146
          %s1148 = sand.u32 %s238, 1
          %s1149 = smul.addr %s1148, 4
          %s1150 = scalar_lea.vmem [#allocation3], %s1149
          %1151 = dma.done %s1147, 64
        $region68: #{tpu_custom_call.1} parent=63 // pred_fallthru
          _
      $region64: #{tpu_custom_call.1} parent=5 // pred_fallthru
        _
    $region6: #{tpu_custom_call.1} parent=1 // loop_footer
      %s24 = sadd.s32 1, %s20
    $region7: #{tpu_custom_call.1} parent=1 // loop_footer_branch
      %19 = sbr.rel target = $region3
    $region8: #{tpu_custom_call.1} parent=1 // loop_exit
      _
    %1152 = vsyncpa [#allocation4], 1
    %s1153 = scalar_lea.sflag [#allocation4], 1
    %1154 = vsyncpa %s1153, 1

</llo_original>
